<compile_context>
chip_gen: v7x
topology: tpu7x:2x2x1
jax: 0.10.0
libtpu: 0.0.40
codegen_flags: <defaults>
</compile_context>

<pallas_src>
import functools

import jax
import jax.numpy as jnp
from jax.experimental import pallas as pl
from jax.experimental.pallas import tpu as pltpu

_N_SUB = 2  # two subject columns (sub_head, sub_tail) at the front of the fused weight


def _casrel_fused_kernel(te_ref, hw_ref, w_ref, b_ref, out_ref, *, n_valid):
    """One grid step = TB batch elements (TB*S rows).

    te_ref : [TB, S, H]   bf16  text_encode block
    hw_ref : [TB, S, 1]   f32   0.5 * (heads_seq + tails_seq)
    w_ref  : [H, NP]      bf16  [w_sub_head | w_sub_tail | w_obj_head | w_obj_tail | 0-pad]
    b_ref  : [1, NP]      f32   matching fused bias row (0-padded)
    out_ref: [TB, S, NP]  f32   sigmoid of fused logits (lane-dense, sliced in wrapper)
    """
    te = te_ref[...]
    hw = hw_ref[...]
    w = w_ref[...]
    b = b_ref[...].reshape(1, 1, -1)

    tb, s, h = te.shape

    # --- single fused MXU projection for all four Linear layers --------------
    fused = jnp.dot(te.reshape(tb * s, h), w,
                    preferred_element_type=jnp.float32)        # [TB*S, NP]
    fused = fused.reshape(tb, s, -1)                           # [TB, S, NP]

    # --- per-batch correction row: c = 0.5*(heads+tails) @ te  (VPU/XLU path) -
    #     te2 = te + c (broadcast over S)  =>  te2 @ W = te @ W + c @ W
    c = jnp.sum(te.astype(jnp.float32) * hw, axis=1)           # [TB, H]
    corr = jnp.dot(c, w.astype(jnp.float32),
                   preferred_element_type=jnp.float32)         # [TB, NP]

    # correction only applies to the object-prediction columns
    col = jax.lax.broadcasted_iota(jnp.int32, (1, corr.shape[-1]), 1)
    obj_mask = ((col >= _N_SUB) & (col < n_valid)).astype(jnp.float32)
    corr = (corr * obj_mask)[:, None, :]                       # [TB, 1, NP]

    logits = fused + b + corr
    out_ref[...] = jax.nn.sigmoid(logits).astype(out_ref.dtype)


def _pick_batch_block(batch, seq, target_rows=1024):
    """Largest batch-block (divisor of batch) with <= target_rows rows per step,
    preferring >=2 grid steps so both v7x TensorCores get work."""
    tb_max = max(1, target_rows // max(seq, 1))
    divisors = [d for d in range(1, batch + 1) if batch % d == 0 and d <= tb_max]
    if not divisors:
        return 1
    multi = [d for d in divisors if batch // d >= 2]
    return max(multi) if multi else max(divisors)


@jax.jit
def casrel_heads(text_encode, heads_seq, tails_seq, params):
    """text_encode: [B, S, H] f32;  heads_seq/tails_seq: [B, S] 0/1 ints."""
    B, S, H = text_encode.shape
    R = params["w_oh"].shape[1]
    n_valid = _N_SUB + 2 * R
    NP = ((n_valid + 127) // 128) * 128          # lane-dense padded output width

    # fused weight / bias: [w_sh | w_st | w_oh | w_ot], zero-padded to NP lanes
    w_all = jnp.concatenate([params["w_sh"], params["w_st"],
                             params["w_oh"], params["w_ot"]], axis=1)
    w_all = jnp.pad(w_all, ((0, 0), (0, NP - n_valid))).astype(jnp.bfloat16)
    b_all = jnp.concatenate([params["b_sh"], params["b_st"],
                             params["b_oh"], params["b_ot"]], axis=1)
    b_all = jnp.pad(b_all, ((0, 0), (0, NP - n_valid))).astype(jnp.float32)

    te = text_encode.astype(jnp.bfloat16)        # halve HBM bytes (mem-bound)
    hw = 0.5 * (heads_seq.astype(jnp.float32) + tails_seq.astype(jnp.float32))
    hw = hw.reshape(B, S, 1)                     # values in {0, 0.5, 1.0}

    TB = _pick_batch_block(B, S)
    grid = (B // TB,)

    grid_spec = pltpu.PrefetchScalarGridSpec(
        num_scalar_prefetch=0,
        grid=grid,
        in_specs=[
            pl.BlockSpec((TB, S, H), lambda i: (i, 0, 0)),   # text_encode block
            pl.BlockSpec((TB, S, 1), lambda i: (i, 0, 0)),   # 0.5*(heads+tails)
            pl.BlockSpec((H, NP), lambda i: (0, 0)),         # fused weights
            pl.BlockSpec((1, NP), lambda i: (0, 0)),         # fused bias row
        ],
        out_specs=pl.BlockSpec((TB, S, NP), lambda i: (i, 0, 0)),
    )

    fused_out = pl.pallas_call(
        functools.partial(_casrel_fused_kernel, n_valid=n_valid),
        out_shape=jax.ShapeDtypeStruct((B, S, NP), jnp.float32),
        grid_spec=grid_spec,
        compiler_params=pltpu.CompilerParams(
            dimension_semantics=("parallel",),
            vmem_limit_bytes=32 * 1024 * 1024,   # safe on v5e/v6e and v7x's 64 MiB VMEM
        ),
    )(te, hw, w_all, b_all)

    # slice the lane-dense fused output back into the four module outputs
    sub_head = fused_out[:, :, 0:1]
    sub_tail = fused_out[:, :, 1:2]
    obj_head = fused_out[:, :, _N_SUB:_N_SUB + R]
    obj_tail = fused_out[:, :, _N_SUB + R:_N_SUB + 2 * R]
    return sub_head, sub_tail, obj_head, obj_tail


def init_params(key, hidden, rel_num):
    """Deterministic parameter init (synthetic; shapes match Cas_Model)."""
    ks = jax.random.split(key, 9)
    scale = 1.0 / jnp.sqrt(hidden)
    return {
        # nn.Linear(768, 1) -> stored as [H, 1] so we can do x @ W + b
        "w_sh": jax.random.normal(ks[0], (hidden, 1), jnp.float32) * scale,
        "b_sh": jax.random.normal(ks[1], (1, 1), jnp.float32) * 0.01,
        "w_st": jax.random.normal(ks[2], (hidden, 1), jnp.float32) * scale,
        "b_st": jax.random.normal(ks[3], (1, 1), jnp.float32) * 0.01,
        # nn.Linear(768, rel_num)
        "w_oh": jax.random.normal(ks[4], (hidden, rel_num), jnp.float32) * scale,
        "b_oh": jax.random.normal(ks[5], (1, rel_num), jnp.float32) * 0.01,
        "w_ot": jax.random.normal(ks[6], (hidden, rel_num), jnp.float32) * scale,
        "b_ot": jax.random.normal(ks[7], (1, rel_num), jnp.float32) * 0.01,
        # synthetic encoder embedding table (stand-in for BERT output)
        "emb": jax.random.normal(ks[8], (64, hidden), jnp.float32) * 0.1,
    }


def synthetic_text_encode(params, input_ids, mask):
    # TODO(synk): stands in for BertModel; masked embedding lookup (plain JAX glue).
    te = params["emb"][input_ids]                      # [B, S, H]
    return te * mask[..., None].astype(jnp.float32)


def reference_forward(params, text_encode, heads_seq, tails_seq):
    """Pure-JAX reference mirroring the PyTorch head math (4 separate linears)."""
    sub_head = jax.nn.sigmoid(text_encode @ params["w_sh"] + params["b_sh"])
    sub_tail = jax.nn.sigmoid(text_encode @ params["w_st"] + params["b_st"])
    heads = heads_seq.astype(jnp.float32)[:, None, :]          # [B,1,S]
    tails = tails_seq.astype(jnp.float32)[:, None, :]
    w1 = jnp.einsum("bis,bsh->bih", heads, text_encode)        # [B,1,H]
    w2 = jnp.einsum("bis,bsh->bih", tails, text_encode)
    te2 = text_encode + (w1 + w2) / 2.0
    obj_head = jax.nn.sigmoid(te2 @ params["w_oh"] + params["b_oh"])
    obj_tail = jax.nn.sigmoid(te2 @ params["w_ot"] + params["b_ot"])
    return sub_head, sub_tail, obj_head, obj_tail


if __name__ == "__main__":
    B, S, H, R, VOCAB = 2, 8, 128, 8, 64

    key = jax.random.PRNGKey(0)
    k_param, k_ids, k_heads, k_tails = jax.random.split(key, 4)

    params = init_params(k_param, H, R)

    input_ids = jax.random.randint(k_ids, (B, S), 0, VOCAB)
    mask = jnp.ones((B, S), dtype=jnp.int32)
    heads_seq = jax.random.bernoulli(k_heads, 0.2, (B, S)).astype(jnp.int32)
    tails_seq = jax.random.bernoulli(k_tails, 0.2, (B, S)).astype(jnp.int32)

    text_encode = synthetic_text_encode(params, input_ids, mask)

    outs = casrel_heads(text_encode, heads_seq, tails_seq, params)
    outs = jax.block_until_ready(outs)

    # Reference on bf16-rounded inputs/weights (the kernel runs bf16 inputs with
    # f32 accumulation), so a loosened tolerance is appropriate.
    rnd = lambda x: x.astype(jnp.bfloat16).astype(jnp.float32)
    params_r = dict(params)
    for k in ("w_sh", "w_st", "w_oh", "w_ot"):
        params_r[k] = rnd(params[k])
    refs = reference_forward(params_r, rnd(text_encode), heads_seq, tails_seq)

    for o, r in zip(outs, refs):
        assert o.shape == r.shape, (o.shape, r.shape)
        err = float(jnp.max(jnp.abs(o - r)))
        assert err < 1e-2, err

    print("KERNEL_OK")
</pallas_src>

<mosaic_0001>
module attributes {stable_mosaic.version = 11 : i64} {
  func.func @_casrel_fused_kernel(%arg0: i32, %arg1: memref<1x8x128xbf16, #tpu.memory_space<vmem>>, %arg2: memref<1x8x1xf32, #tpu.memory_space<vmem>>, %arg3: memref<128x128xbf16, #tpu.memory_space<vmem>>, %arg4: memref<1x128xf32, #tpu.memory_space<vmem>>, %arg5: memref<1x8x128xf32, #tpu.memory_space<vmem>>) attributes {dimension_semantics = [#tpu.dimension_semantics<parallel>], iteration_bounds = array<i64: 2>, scalar_prefetch = 0 : i64, scratch_operands = 0 : i64, tpu.core_type = #tpu.core_type<tc>, window_params = [{transform_indices = @transform_0, window_bounds = array<i64: 1, 8, 128>}, {transform_indices = @transform_1, window_bounds = array<i64: 1, 8, 1>}, {pipeline_mode = #tpu.pipeline_mode<synchronous>, transform_indices = @transform_2, window_bounds = array<i64: 128, 128>}, {pipeline_mode = #tpu.pipeline_mode<synchronous>, transform_indices = @transform_3, window_bounds = array<i64: 1, 128>}, {transform_indices = @transform_4, window_bounds = array<i64: 1, 8, 128>}]} {
    %c0 = arith.constant 0 : index
    %c0_0 = arith.constant 0 : index
    %c0_1 = arith.constant 0 : index
    %0 = vector.load %arg1[%c0, %c0_0, %c0_1] : memref<1x8x128xbf16, #tpu.memory_space<vmem>>, vector<1x8x128xbf16>
    %c0_2 = arith.constant 0 : index
    %c0_3 = arith.constant 0 : index
    %c0_4 = arith.constant 0 : index
    %1 = vector.load %arg2[%c0_2, %c0_3, %c0_4] : memref<1x8x1xf32, #tpu.memory_space<vmem>>, vector<1x8x1xf32>
    %c0_5 = arith.constant 0 : index
    %c0_6 = arith.constant 0 : index
    %2 = vector.load %arg3[%c0_5, %c0_6] : memref<128x128xbf16, #tpu.memory_space<vmem>>, vector<128x128xbf16>
    %c0_7 = arith.constant 0 : index
    %c0_8 = arith.constant 0 : index
    %3 = vector.load %arg4[%c0_7, %c0_8] : memref<1x128xf32, #tpu.memory_space<vmem>>, vector<1x128xf32>
    %4 = vector.shape_cast %3 : vector<1x128xf32> to vector<1x1x128xf32>
    %5 = vector.shape_cast %0 : vector<1x8x128xbf16> to vector<8x128xbf16>
    %cst = arith.constant dense<0.000000e+00> : vector<8x128xf32>
    %6 = tpu.matmul %5, %2, %cst {dimension_numbers = #tpu.dot_dimension_numbers<[1], [0], [0], [1], [0, 0, 1, 1], [], []>} : vector<8x128xbf16>, vector<128x128xbf16>, vector<8x128xf32> -> vector<8x128xf32>
    %7 = vector.shape_cast %6 : vector<8x128xf32> to vector<1x8x128xf32>
    %8 = arith.extf %0 : vector<1x8x128xbf16> to vector<1x8x128xf32>
    %9 = vector.broadcast %1 : vector<1x8x1xf32> to vector<1x8x128xf32>
    %10 = arith.mulf %8, %9 : vector<1x8x128xf32>
    %cst_9 = arith.constant dense<0.000000e+00> : vector<1x128xf32>
    %11 = vector.multi_reduction <add>, %10, %cst_9 [1] : vector<1x8x128xf32> to vector<1x128xf32>
    %12 = arith.extf %2 : vector<128x128xbf16> to vector<128x128xf32>
    %cst_10 = arith.constant dense<0.000000e+00> : vector<1x128xf32>
    %13 = tpu.matmul %11, %12, %cst_10 {dimension_numbers = #tpu.dot_dimension_numbers<[1], [0], [0], [1], [0, 0, 1, 1], [], []>} : vector<1x128xf32>, vector<128x128xf32>, vector<1x128xf32> -> vector<1x128xf32>
    %14 = tpu.iota {dimensions = array<i32: 1>} : vector<1x128xi32>
    %c2_i32 = arith.constant 2 : i32
    %15 = vector.broadcast %c2_i32 : i32 to vector<1x128xi32>
    %16 = arith.cmpi sge, %14, %15 : vector<1x128xi32>
    %c18_i32 = arith.constant 18 : i32
    %17 = vector.broadcast %c18_i32 : i32 to vector<1x128xi32>
    %18 = arith.cmpi slt, %14, %17 : vector<1x128xi32>
    %19 = arith.andi %16, %18 : vector<1x128xi1>
    %20 = arith.extui %19 : vector<1x128xi1> to vector<1x128xi32>
    %21 = arith.sitofp %20 : vector<1x128xi32> to vector<1x128xf32>
    %22 = arith.mulf %13, %21 : vector<1x128xf32>
    %23 = vector.shape_cast %22 : vector<1x128xf32> to vector<1x1x128xf32>
    %24 = vector.broadcast %4 : vector<1x1x128xf32> to vector<1x8x128xf32>
    %25 = arith.addf %7, %24 : vector<1x8x128xf32>
    %26 = vector.broadcast %23 : vector<1x1x128xf32> to vector<1x8x128xf32>
    %27 = arith.addf %25, %26 : vector<1x8x128xf32>
    %28 = arith.negf %27 : vector<1x8x128xf32>
    %29 = math.exp %28 : vector<1x8x128xf32>
    %cst_11 = arith.constant 1.000000e+00 : f32
    %30 = vector.broadcast %cst_11 : f32 to vector<1x8x128xf32>
    %31 = arith.addf %30, %29 : vector<1x8x128xf32>
    %32 = arith.divf %30, %31 : vector<1x8x128xf32>
    %c0_12 = arith.constant 0 : index
    %c0_13 = arith.constant 0 : index
    %c0_14 = arith.constant 0 : index
    %33 = vector.load %arg5[%c0_12, %c0_13, %c0_14] : memref<1x8x128xf32, #tpu.memory_space<vmem>>, vector<1x8x128xf32>
    tpu.vector_store %arg5[%c0_12, %c0_13, %c0_14], %32 {strides = array<i32>} : memref<1x8x128xf32, #tpu.memory_space<vmem>>, vector<1x8x128xf32>,
    return
  }
  func.func @transform_0(%arg0: i32) -> (i32, i32, i32) {
    %c0_i32 = arith.constant 0 : i32
    %c0_i32_0 = arith.constant 0 : i32
    %c0_i32_1 = arith.constant 0 : i32
    return %arg0, %c0_i32, %c0_i32_0 : i32, i32, i32
  }
  func.func @transform_1(%arg0: i32) -> (i32, i32, i32) {
    %c0_i32 = arith.constant 0 : i32
    %c0_i32_0 = arith.constant 0 : i32
    %c0_i32_1 = arith.constant 0 : i32
    return %arg0, %c0_i32, %c0_i32_0 : i32, i32, i32
  }
  func.func @transform_2(%arg0: i32) -> (i32, i32) {
    %c0_i32 = arith.constant 0 : i32
    %c0_i32_0 = arith.constant 0 : i32
    %c0_i32_1 = arith.constant 0 : i32
    return %c0_i32, %c0_i32_0 : i32, i32
  }
  func.func @transform_3(%arg0: i32) -> (i32, i32) {
    %c0_i32 = arith.constant 0 : i32
    %c0_i32_0 = arith.constant 0 : i32
    %c0_i32_1 = arith.constant 0 : i32
    return %c0_i32, %c0_i32_0 : i32, i32
  }
  func.func @transform_4(%arg0: i32) -> (i32, i32, i32) {
    %c0_i32 = arith.constant 0 : i32
    %c0_i32_0 = arith.constant 0 : i32
    %c0_i32_1 = arith.constant 0 : i32
    return %arg0, %c0_i32, %c0_i32_0 : i32, i32, i32
  }
}

</mosaic_0001>

<llo_original>
// kernel: casrel_heads.1
$region0: #{casrel_heads.1}
  #allocation0 [shape = 'u32[]', space=smem, size = 0x4, offset = 0x4, fixed_abs, tag = 'smem constant byte address 0x4 - core index']
  #allocation1 [shape = 'u32[144,128]{1,0:T(1,128)}', space=vmem, size = 0x12000, scoped, tag = 'internal scratch']
  %s0 = inlined_call_operand.vmem [shape: bf16[2,8,128], index: 0, kind: input, shape index: {}]
  %s1 = inlined_call_operand.vmem [shape: f32[2,8,1], index: 1, kind: input, shape index: {}]
  %s2 = inlined_call_operand.vmem [shape: bf16[128,128], index: 2, kind: input, shape index: {}]
  %s3 = inlined_call_operand.vmem [shape: f32[1,128], index: 3, kind: input, shape index: {}]
  %s4 = inlined_call_operand.vmem [shape: f32[2,8,128], index: 4, kind: output, shape index: {}]
  %s5 = sld [smem:[#allocation0]]
  $region49: #{casrel_heads.1} parent=0
    _
  %s7 = ssub.s32 1, %s5
  %s8 = scalar_select 0, %s7, %s5
  loop: start=0, step=1, limit=4
  $region2: #{casrel_heads.1} parent=0 // loop_pre_header
    _
  $region3: #{casrel_heads.1} parent=0 // loop_header
    %s10 = sphi 0, %s14
    %p11 = scmp.ge.s32.totalorder %s10, 4
    %s20 = sphi 0, %s22
    %s23 = sphi 0, %s20
    %s24 = sphi 0, %s23
    %s40 = sphi 0, %s24
    %s46 = sphi 0, %s48
    %s49 = sphi 0, %s46
    %s50 = sphi 0, %s49
    %s66 = sphi 0, %s50
    %s70 = sphi 0, %s70
    %s72 = sphi 0, %s70
    %s73 = sphi 0, %s72
    %s87 = sphi 0, %s73
    %s91 = sphi 0, %s91
    %s93 = sphi 0, %s91
    %s94 = sphi 0, %s93
    %s108 = sphi 0, %s94
    %s114 = sphi 0, %s116
    %s117 = sphi 0, %s114
    %s118 = sphi 0, %s117
    %s134 = sphi 0, %s118
  $region4: #{casrel_heads.1} parent=0 // loop_header_branch
    %13 = sbr.rel (%p11) target = $region8
  $region5: #{casrel_heads.1} parent=0 // loop_body
    %s15 = ssub.s32 %s10, 1
    %s16 = ssub.s32 %s10, 2
    %s17 = sadd.s32 %s10, 1
    %s18 = ssub.s32 %s10, %s17
    %p19 = scmp.eq.s32.totalorder %s18, 0
    %s21 = sadd.s32 %s20, 1
    %s22 = scalar_select %p19, %s20, %s21
    %p25 = pneg %p19
    %p26 = scmp.eq.s32.totalorder %s10, 1
    %p27 = por %p25, %p26
    %p28 = scmp.ne.s32.totalorder %s20, %s23
    %p29 = scmp.eq.s32.totalorder %s10, 0
    %p30 = por %p28, %p29
    %p31 = scmp.ne.s32.totalorder %s20, %s23
    %p32 = scmp.eq.s32.totalorder %s15, 1
    %p33 = por %p31, %p32
    %p34 = scmp.ne.s32.totalorder %s23, %s24
    %p35 = scmp.eq.s32.totalorder %s15, 0
    %p36 = por %p34, %p35
    %p37 = scmp.ne.s32.totalorder %s23, %s24
    %p38 = scmp.eq.s32.totalorder %s16, 1
    %p39 = por %p37, %p38
    %p41 = scmp.ne.s32.totalorder %s24, %s40
    %p42 = scmp.eq.s32.totalorder %s16, 0
    %p43 = por %p41, %p42
    %s44 = ssub.s32 %s10, %s17
    %p45 = scmp.eq.s32.totalorder %s44, 0
    %s47 = sadd.s32 %s46, 1
    %s48 = scalar_select %p45, %s46, %s47
    %p51 = pneg %p45
    %p52 = scmp.eq.s32.totalorder %s10, 1
    %p53 = por %p51, %p52
    %p54 = scmp.ne.s32.totalorder %s46, %s49
    %p55 = scmp.eq.s32.totalorder %s10, 0
    %p56 = por %p54, %p55
    %p57 = scmp.ne.s32.totalorder %s46, %s49
    %p58 = scmp.eq.s32.totalorder %s15, 1
    %p59 = por %p57, %p58
    %p60 = scmp.ne.s32.totalorder %s49, %s50
    %p61 = scmp.eq.s32.totalorder %s15, 0
    %p62 = por %p60, %p61
    %p63 = scmp.ne.s32.totalorder %s49, %s50
    %p64 = scmp.eq.s32.totalorder %s16, 1
    %p65 = por %p63, %p64
    %p67 = scmp.ne.s32.totalorder %s50, %s66
    %p68 = scmp.eq.s32.totalorder %s16, 0
    %p69 = por %p67, %p68
    %s71 = sadd.s32 %s70, 1
    %p74 = scmp.eq.s32.totalorder %s10, 1
    %p75 = scmp.ne.s32.totalorder %s70, %s72
    %p76 = scmp.eq.s32.totalorder %s10, 0
    %p77 = por %p75, %p76
    %p78 = scmp.ne.s32.totalorder %s70, %s72
    %p79 = scmp.eq.s32.totalorder %s15, 1
    %p80 = por %p78, %p79
    %p81 = scmp.ne.s32.totalorder %s72, %s73
    %p82 = scmp.eq.s32.totalorder %s15, 0
    %p83 = por %p81, %p82
    %p84 = scmp.ne.s32.totalorder %s72, %s73
    %p85 = scmp.eq.s32.totalorder %s16, 1
    %p86 = por %p84, %p85
    %p88 = scmp.ne.s32.totalorder %s73, %s87
    %p89 = scmp.eq.s32.totalorder %s16, 0
    %p90 = por %p88, %p89
    %s92 = sadd.s32 %s91, 1
    %p95 = scmp.eq.s32.totalorder %s10, 1
    %p96 = scmp.ne.s32.totalorder %s91, %s93
    %p97 = scmp.eq.s32.totalorder %s10, 0
    %p98 = por %p96, %p97
    %p99 = scmp.ne.s32.totalorder %s91, %s93
    %p100 = scmp.eq.s32.totalorder %s15, 1
    %p101 = por %p99, %p100
    %p102 = scmp.ne.s32.totalorder %s93, %s94
    %p103 = scmp.eq.s32.totalorder %s15, 0
    %p104 = por %p102, %p103
    %p105 = scmp.ne.s32.totalorder %s93, %s94
    %p106 = scmp.eq.s32.totalorder %s16, 1
    %p107 = por %p105, %p106
    %p109 = scmp.ne.s32.totalorder %s94, %s108
    %p110 = scmp.eq.s32.totalorder %s16, 0
    %p111 = por %p109, %p110
    %s112 = ssub.s32 %s10, %s17
    %p113 = scmp.eq.s32.totalorder %s112, 0
    %s115 = sadd.s32 %s114, 1
    %s116 = scalar_select %p113, %s114, %s115
    %p119 = pneg %p113
    %p120 = scmp.eq.s32.totalorder %s10, 1
    %p121 = por %p119, %p120
    %p122 = scmp.ne.s32.totalorder %s114, %s117
    %p123 = scmp.eq.s32.totalorder %s10, 0
    %p124 = por %p122, %p123
    %p125 = scmp.ne.s32.totalorder %s114, %s117
    %p126 = scmp.eq.s32.totalorder %s15, 1
    %p127 = por %p125, %p126
    %p128 = scmp.ne.s32.totalorder %s117, %s118
    %p129 = scmp.eq.s32.totalorder %s15, 0
    %p130 = por %p128, %p129
    %p131 = scmp.ne.s32.totalorder %s117, %s118
    %p132 = scmp.eq.s32.totalorder %s16, 1
    %p133 = por %p131, %p132
    %p135 = scmp.ne.s32.totalorder %s118, %s134
    %p136 = scmp.eq.s32.totalorder %s16, 0
    %p137 = por %p135, %p136
    %p138 = scmp.le.s32.totalorder 1, %s10
    %p139 = scmp.lt.s32.totalorder %s10, 3
    %p140 = pnand %p138, %p139
    %p141 = pneg %p140
    // Predicated region
    $region9: #{casrel_heads.1} parent=5 // pred_check
      _
    $region10: #{casrel_heads.1} parent=5 // pred_check_branch
      %143 = sbr.rel (%p140) target = $region12
    $region11: #{casrel_heads.1} parent=5 // pred_region
      %s144 = ssub.s32 %s10, 1
      // Predicated region
      $region13: #{casrel_heads.1} parent=11 // pred_check
        %p145 = pneg %p83
      $region14: #{casrel_heads.1} parent=11 // pred_check_branch
        %147 = sbr.rel (%p145) target = $region16
      $region15: #{casrel_heads.1} parent=11 // pred_region
        _
      $region16: #{casrel_heads.1} parent=11 // pred_fallthru
        _
      // Predicated region
      $region17: #{casrel_heads.1} parent=11 // pred_check
        %p148 = pneg %p104
      $region18: #{casrel_heads.1} parent=11 // pred_check_branch
        %150 = sbr.rel (%p148) target = $region20
      $region19: #{casrel_heads.1} parent=11 // pred_region
        _
      $region20: #{casrel_heads.1} parent=11 // pred_fallthru
        _
    $region12: #{casrel_heads.1} parent=5 // pred_fallthru
      _
    %p151 = scmp.lt.s32.totalorder %s10, 2
    // Predicated region
    $region21: #{casrel_heads.1} parent=5 // pred_check
      %p152 = pneg %p151
    $region22: #{casrel_heads.1} parent=5 // pred_check_branch
      %154 = sbr.rel (%p152) target = $region24
    $region23: #{casrel_heads.1} parent=5 // pred_region
      // Predicated region
      $region25: #{casrel_heads.1} parent=23 // pred_check
        %p155 = pneg %p30
      $region26: #{casrel_heads.1} parent=23 // pred_check_branch
        %157 = sbr.rel (%p155) target = $region28
      $region27: #{casrel_heads.1} parent=23 // pred_region
        %p158 = scmp.lt.s32.totalorder %s10, 1
        %s159 = scalar_select %p158, %s10, 1
        %s160 = smul.addr %s159, 4
        %s161 = scalar_lea.vmem %s0, %s160
      $region28: #{casrel_heads.1} parent=23 // pred_fallthru
        _
      // Predicated region
      $region29: #{casrel_heads.1} parent=23 // pred_check
        %p162 = pneg %p56
      $region30: #{casrel_heads.1} parent=23 // pred_check_branch
        %164 = sbr.rel (%p162) target = $region32
      $region31: #{casrel_heads.1} parent=23 // pred_region
        %p165 = scmp.lt.s32.totalorder %s10, 1
        %s166 = scalar_select %p165, %s10, 1
        %s167 = smul.addr %s166, 8
        %s168 = scalar_lea.vmem %s1, %s167
      $region32: #{casrel_heads.1} parent=23 // pred_fallthru
        _
    $region24: #{casrel_heads.1} parent=5 // pred_fallthru
      _
    %p169 = scmp.le.s32.totalorder 1, %s10
    %p170 = scmp.lt.s32.totalorder %s10, 3
    %p171 = pnand %p169, %p170
    %p172 = pneg %p171
    // Predicated region
    $region33: #{casrel_heads.1} parent=5 // pred_check
      _
    $region34: #{casrel_heads.1} parent=5 // pred_check_branch
      %174 = sbr.rel (%p171) target = $region36
    $region35: #{casrel_heads.1} parent=5 // pred_region
      %s175 = ssub.s32 %s10, 1
      %p176 = scmp.lt.s32.totalorder %s15, 1
      %s177 = scalar_select %p176, %s15, 1
      %s178 = smul.addr %s177, 4
      %s179 = scalar_lea.vmem %s0, %s178
      %p180 = pneg %p36
      %p181 = pneg %p33
      %p182 = scmp.lt.s32.totalorder %s15, 1
      %s183 = scalar_select %p182, %s15, 1
      %s184 = smul.addr %s183, 8
      %s185 = scalar_lea.vmem %s1, %s184
      %p186 = pneg %p62
      %p187 = pneg %p59
      %p188 = pneg %p83
      %p189 = pneg %p80
      %p190 = pneg %p104
      %p191 = pneg %p101
      %p192 = pneg %p130
      %p193 = pneg %p127
      %p194 = scmp.lt.s32.totalorder %s15, 1
      %s195 = scalar_select %p194, %s15, 1
      %s196 = smul.addr %s195, 8
      %s197 = scalar_lea.vmem %s4, %s196
      %p198 = scmp.lt.s32.totalorder %s15, 1
      %s199 = scalar_select %p198, %s15, 1
      %s200 = smul.addr %s199, 4
      %s201 = scalar_lea.vmem %s0, %s200
      %p202 = scmp.lt.s32.totalorder %s15, 1
      %s203 = scalar_select %p202, %s15, 1
      %s204 = smul.addr %s203, 8
      %s205 = scalar_lea.vmem %s1, %s204
      %p206 = scmp.lt.s32.totalorder %s15, 1
      %s207 = scalar_select %p206, %s15, 1
      %s208 = smul.addr %s207, 8
      %s209 = scalar_lea.vmem %s4, %s208
      %v211 = vld [vmem:[%s201] sm:$0xf]
      %v212 = vld [vmem:[%s205] sm:$0xff]
      %v213 = vld [vmem:[%s2] sm:$0xf]
      %v214 = vld [vmem:[%s2 + $0x4] sm:$0xf]
      %v215 = vld [vmem:[%s2 + $0x8] sm:$0xf]
      %v216 = vld [vmem:[%s2 + $0xc] sm:$0xf]
      %v217 = vld [vmem:[%s2 + $0x10] sm:$0xf]
      %v218 = vld [vmem:[%s2 + $0x14] sm:$0xf]
      %v219 = vld [vmem:[%s2 + $0x18] sm:$0xf]
      %v220 = vld [vmem:[%s2 + $0x1c] sm:$0xf]
      %v221 = vld [vmem:[%s2 + $0x20] sm:$0xf]
      %v222 = vld [vmem:[%s2 + $0x24] sm:$0xf]
      %v223 = vld [vmem:[%s2 + $0x28] sm:$0xf]
      %v224 = vld [vmem:[%s2 + $0x2c] sm:$0xf]
      %v225 = vld [vmem:[%s2 + $0x30] sm:$0xf]
      %v226 = vld [vmem:[%s2 + $0x34] sm:$0xf]
      %v227 = vld [vmem:[%s2 + $0x38] sm:$0xf]
      %v228 = vld [vmem:[%s2 + $0x3c] sm:$0xf]
      %v229 = vld [vmem:[%s3] sm:$0x1]
      %v246 = vunpack.c.l.b16 %v213
      %v247 = vunpack.c.l.b16 %v214
      %v248 = vunpack.c.l.b16 %v215
      %v249 = vunpack.c.l.b16 %v216
      %v250 = vunpack.c.l.b16 %v217
      %v251 = vunpack.c.l.b16 %v218
      %v252 = vunpack.c.l.b16 %v219
      %v253 = vunpack.c.l.b16 %v220
      %v254 = vunpack.c.l.b16 %v221
      %v255 = vunpack.c.l.b16 %v222
      %v256 = vunpack.c.l.b16 %v223
      %v257 = vunpack.c.l.b16 %v224
      %v258 = vunpack.c.l.b16 %v225
      %v259 = vunpack.c.l.b16 %v226
      %v260 = vunpack.c.l.b16 %v227
      %v261 = vunpack.c.l.b16 %v228
      %v262 = vpack.c.b16 %v247, %v246
      %v263 = vpack.c.b16 %v249, %v248
      %v264 = vpack.c.b16 %v251, %v250
      %v265 = vpack.c.b16 %v253, %v252
      %v266 = vpack.c.b16 %v255, %v254
      %v267 = vpack.c.b16 %v257, %v256
      %v268 = vpack.c.b16 %v259, %v258
      %v269 = vpack.c.b16 %v261, %v260
      %278 = vmatprep.subr.bf16.mxu0 0
      %279 = vmatpush1.bf16.msra.mxu0 %v262
      %280 = vmatprep.subr.bf16.mxu0 0
      %281 = vmatpush1.bf16.msra.mxu0 %v263
      %282 = vmatprep.subr.bf16.mxu0 0
      %283 = vmatpush1.bf16.msra.mxu0 %v264
      %284 = vmatprep.subr.bf16.mxu0 0
      %285 = vmatpush1.bf16.msra.mxu0 %v265
      %286 = vmatprep.subr.bf16.mxu0 0
      %287 = vmatpush1.bf16.msra.mxu0 %v266
      %288 = vmatprep.subr.bf16.mxu0 0
      %289 = vmatpush1.bf16.msra.mxu0 %v267
      %290 = vmatprep.subr.bf16.mxu0 0
      %291 = vmatpush1.bf16.msra.mxu0 %v268
      %292 = vmatprep.subr.bf16.mxu0 0
      %293 = vmatpush1.bf16.msra.mxu0 %v269
      %294 = vmatprep.subr.bf16.mxu0 0
      %295 = vmatpush1.bf16.msra.mxu0 0
      %296 = vmatprep.subr.bf16.mxu0 0
      %297 = vmatpush1.bf16.msra.mxu0 0
      %298 = vmatprep.subr.bf16.mxu0 0
      %299 = vmatpush1.bf16.msra.mxu0 0
      %300 = vmatprep.subr.bf16.mxu0 0
      %301 = vmatpush1.bf16.msra.mxu0 0
      %302 = vmatprep.subr.bf16.mxu0 0
      %303 = vmatpush1.bf16.msra.mxu0 0
      %304 = vmatprep.subr.bf16.mxu0 0
      %305 = vmatpush1.bf16.msra.mxu0 0
      %306 = vmatprep.subr.bf16.mxu0 0
      %307 = vmatpush1.bf16.msra.mxu0 0
      %308 = vmatprep.subr.bf16.mxu0 0
      %309 = vmatpush1.bf16.msra.mxu0 0
      %310 = vmatprep.mubr.bf16.mxu0 0
      %311 = vmatmul.mubr.bf16.gmra.mrb[0].mxu0 %v211
      %v312 = vpop.f32.mrb[0].mxu0
      %v313 = vadd.f32 0.0, %v312
      %v314 = vpop.f32.mrb[0].mxu0
      %v315 = vpop.f32.mrb[0].mxu0
      %v316 = vpop.f32.mrb[0].mxu0
      %317 = vdwg.mxu0
      %v318 = vunpack.c.l.bf16 %v211
      %320 = vset.pattern.permute.xlu0 0
      %321 = vperm.xlu0 %320, %v212
      %v322 = vpop.permute.xlu0 %321
      %v324 = vmul.f32 %v318, %v322
      %v325 = vrot.slane %v324, 4
      %v326 = vadd.f32 %v324, %v325
      %v327 = vrot.slane %v326, 2
      %v328 = vadd.f32 %v326, %v327
      %v329 = vrot.slane %v328, 1
      %v330 = vadd.f32 %v328, %v329
      %v331 = vunpack.c.l.bf16 %v213
      %v332 = vunpack.c.l.bf16 %v214
      %v333 = vunpack.c.l.bf16 %v215
      %v334 = vunpack.c.l.bf16 %v216
      %v335 = vunpack.c.l.bf16 %v217
      %v336 = vunpack.c.l.bf16 %v218
      %v337 = vunpack.c.l.bf16 %v219
      %v338 = vunpack.c.l.bf16 %v220
      %v339 = vunpack.c.l.bf16 %v221
      %v340 = vunpack.c.l.bf16 %v222
      %v341 = vunpack.c.l.bf16 %v223
      %v342 = vunpack.c.l.bf16 %v224
      %v343 = vunpack.c.l.bf16 %v225
      %v344 = vunpack.c.l.bf16 %v226
      %v345 = vunpack.c.l.bf16 %v227
      %v346 = vunpack.c.l.bf16 %v228
      %347 = vmatprep.subr.mxu0 0.0
      %348 = vmatpush1.msra.mxu0 %v331
      %349 = vmatprep.subr.mxu0 0.0
      %350 = vmatpush1.msra.mxu0 %v332
      %351 = vmatprep.subr.mxu0 0.0
      %352 = vmatpush1.msra.mxu0 %v333
      %353 = vmatprep.subr.mxu0 0.0
      %354 = vmatpush1.msra.mxu0 %v334
      %355 = vmatprep.subr.mxu0 0.0
      %356 = vmatpush1.msra.mxu0 %v335
      %357 = vmatprep.subr.mxu0 0.0
      %358 = vmatpush1.msra.mxu0 %v336
      %359 = vmatprep.subr.mxu0 0.0
      %360 = vmatpush1.msra.mxu0 %v337
      %361 = vmatprep.subr.mxu0 0.0
      %362 = vmatpush1.msra.mxu0 %v338
      %363 = vmatprep.subr.mxu0 0.0
      %364 = vmatpush1.msra.mxu0 %v339
      %365 = vmatprep.subr.mxu0 0.0
      %366 = vmatpush1.msra.mxu0 %v340
      %367 = vmatprep.subr.mxu0 0.0
      %368 = vmatpush1.msra.mxu0 %v341
      %369 = vmatprep.subr.mxu0 0.0
      %370 = vmatpush1.msra.mxu0 %v342
      %371 = vmatprep.subr.mxu0 0.0
      %372 = vmatpush1.msra.mxu0 %v343
      %373 = vmatprep.subr.mxu0 0.0
      %374 = vmatpush1.msra.mxu0 %v344
      %375 = vmatprep.subr.mxu0 0.0
      %376 = vmatpush1.msra.mxu0 %v345
      %377 = vmatprep.subr.mxu0 0.0
      %378 = vmatpush1.msra.mxu0 %v346
      %379 = vmatprep.subr.mxu0 0.0
      %380 = vmatpush1.msra.mxu0 0.0
      %381 = vmatprep.subr.mxu0 0.0
      %382 = vmatpush1.msra.mxu0 0.0
      %383 = vmatprep.subr.mxu0 0.0
      %384 = vmatpush1.msra.mxu0 0.0
      %385 = vmatprep.subr.mxu0 0.0
      %386 = vmatpush1.msra.mxu0 0.0
      %387 = vmatprep.subr.mxu0 0.0
      %388 = vmatpush1.msra.mxu0 0.0
      %389 = vmatprep.subr.mxu0 0.0
      %390 = vmatpush1.msra.mxu0 0.0
      %391 = vmatprep.subr.mxu0 0.0
      %392 = vmatpush1.msra.mxu0 0.0
      %393 = vmatprep.subr.mxu0 0.0
      %394 = vmatpush1.msra.mxu0 0.0
      %395 = vmatprep.subr.mxu0 0.0
      %396 = vmatpush1.msra.mxu0 0.0
      %397 = vmatprep.subr.mxu0 0.0
      %398 = vmatpush1.msra.mxu0 0.0
      %399 = vmatprep.subr.mxu0 0.0
      %400 = vmatpush1.msra.mxu0 0.0
      %401 = vmatprep.subr.mxu0 0.0
      %402 = vmatpush1.msra.mxu0 0.0
      %403 = vmatprep.subr.mxu0 0.0
      %404 = vmatpush1.msra.mxu0 0.0
      %405 = vmatprep.subr.mxu0 0.0
      %406 = vmatpush1.msra.mxu0 0.0
      %407 = vmatprep.subr.mxu0 0.0
      %408 = vmatpush1.msra.mxu0 0.0
      %409 = vmatprep.subr.mxu0 0.0
      %410 = vmatpush1.msra.mxu0 0.0
      %411 = vmatprep.mubr.f32.mxu0 0.0
      %412 = vmatmul.mubr.f32.gmra.mrb[0].mxu0 %v330
      %v413 = vpop.f32.mrb[0].mxu0
      %v414 = vadd.f32 0.0, %v413
      %v415 = vpop.f32.mrb[0].mxu0
      %416 = vdwg.mxu0
      %v417 = vlaneseq
      %v418 = vand.u32 %v417, 127
      %vm419 = vcmp.ge.s32.totalorder %v418, 2
      %vm420 = vcmp.lt.s32.totalorder %v418, 18
      %vm421 = vmand %vm419, %vm420
      %v422 = vsel %vm421, 1, 0
      %v423 = vcvt.s32.f32 %v422
      %v424 = vmul.f32 %v414, %v423
      %v426 = vlaneseq
      %v427 = vshrl.u32 %v426, 7
      %v428 = vsub.s32 0, %v427
      %v429 = vrot.slane %v229, %v428
      %v431 = vadd.f32 %v313, %v429
      %v432 = vlaneseq
      %v433 = vshrl.u32 %v432, 7
      %v434 = vsub.s32 0, %v433
      %v435 = vrot.slane %v424, %v434
      %v436 = vadd.f32 %v431, %v435
      %v437 = vxor.u32 %v436, 2147483648
      %v438 = vmul.f32 %v437, 1.442695
      %v439 = vpow.pop %v438
      %v440 = vadd.f32 %v439, 1.0
      %v441 = vrcp.pop %v440
      %v442 = vmul.f32 1.0, %v441
      %443 = vst [vmem:[%s209] sm:$0xff] %v442
      %p444 = scmp.lt.s32.totalorder %s15, 1
      %s445 = scalar_select %p444, %s15, 1
      %s446 = smul.addr %s445, 8
      %s447 = scalar_lea.vmem %s4, %s446
      // Predicated region
      $region37: #{casrel_heads.1} parent=35 // pred_check
        %p448 = pneg %p127
      $region38: #{casrel_heads.1} parent=35 // pred_check_branch
        %450 = sbr.rel (%p448) target = $region40
      $region39: #{casrel_heads.1} parent=35 // pred_region
        _
      $region40: #{casrel_heads.1} parent=35 // pred_fallthru
        _
    $region36: #{casrel_heads.1} parent=5 // pred_fallthru
      _
    %p451 = scmp.le.s32.totalorder 2, %s10
    // Predicated region
    $region41: #{casrel_heads.1} parent=5 // pred_check
      %p452 = pneg %p451
    $region42: #{casrel_heads.1} parent=5 // pred_check_branch
      %454 = sbr.rel (%p452) target = $region44
    $region43: #{casrel_heads.1} parent=5 // pred_region
      %s455 = ssub.s32 %s10, 2
      // Predicated region
      $region45: #{casrel_heads.1} parent=43 // pred_check
        %p456 = pneg %p133
      $region46: #{casrel_heads.1} parent=43 // pred_check_branch
        %458 = sbr.rel (%p456) target = $region48
      $region47: #{casrel_heads.1} parent=43 // pred_region
        %p459 = scmp.lt.s32.totalorder %s16, 1
        %s460 = scalar_select %p459, %s16, 1
        %s461 = smul.addr %s460, 8
        %s462 = scalar_lea.vmem %s4, %s461
      $region48: #{casrel_heads.1} parent=43 // pred_fallthru
        _
    $region44: #{casrel_heads.1} parent=5 // pred_fallthru
      _
  $region6: #{casrel_heads.1} parent=0 // loop_footer
    %s14 = sadd.s32 1, %s10
  $region7: #{casrel_heads.1} parent=0 // loop_footer_branch
    %9 = sbr.rel target = $region3
  $region8: #{casrel_heads.1} parent=0 // loop_exit
    _

</llo_original>
